<compile_context>
chip_gen: v7x
topology: tpu7x:2x2x1
jax: 0.10.0
libtpu: 0.0.40
codegen_flags: <defaults>
</compile_context>

<pallas_src>
import functools

import jax
import jax.numpy as jnp
from jax import lax
from jax.experimental import pallas as pl
from jax.experimental.pallas import tpu as pltpu

BN_EPS = 1e-5
DEFAULT_TILE_B = 512                 # multiple of 128 (v5e aligned), small VMEM
VMEM_LIMIT_BYTES = 48 * 1024 * 1024  # > 16/32 MiB scoped defaults, < 64 MiB v7x


def _stats_kernel(x_ref, w1_ref, gamma_ref, beta_ref, scale_ref, shift_ref,
                  sum_sc, sumsq_sc, *, batch, tile_b):
    """Pass 1: accumulate per-feature sum / sum-of-squares of g = x @ w1 and,
    on the final grid step, fold BN into (scale, shift) outputs."""
    i = pl.program_id(0)

    @pl.when(i == 0)
    def _():
        sum_sc[...] = jnp.zeros_like(sum_sc)
        sumsq_sc[...] = jnp.zeros_like(sumsq_sc)

    xb = x_ref[...].astype(jnp.bfloat16)                    # bf16 MXU operand
    g = jnp.dot(xb, w1_ref[...], preferred_element_type=jnp.float32)

    # Mask rows past the true batch size (batch was padded to a tile multiple),
    # so the BN statistics are computed over exactly `batch` rows.
    row = lax.broadcasted_iota(jnp.int32, (tile_b, 1), 0) + i * tile_b
    g = jnp.where(row < batch, g, 0.0)

    sum_sc[...] += jnp.sum(g, axis=0, keepdims=True)
    sumsq_sc[...] += jnp.sum(g * g, axis=0, keepdims=True)

    @pl.when(i == pl.num_programs(0) - 1)
    def _():
        inv_b = jnp.float32(1.0 / batch)
        mean = sum_sc[...] * inv_b
        var = sumsq_sc[...] * inv_b - mean * mean           # biased (training)
        scale = gamma_ref[...] * lax.rsqrt(var + BN_EPS)
        scale_ref[...] = scale
        shift_ref[...] = beta_ref[...] - mean * scale


def _apply_kernel(x_ref, w1_ref, scale_ref, shift_ref, w2_ref, b2_ref, out_ref):
    """Pass 2: folded BN scale/shift, ReLU, ffw2 as VPU multiply + reduction."""
    xb = x_ref[...].astype(jnp.bfloat16)
    g = jnp.dot(xb, w1_ref[...], preferred_element_type=jnp.float32)

    h = g * scale_ref[...] + shift_ref[...]                 # folded BatchNorm
    h = jnp.maximum(h, 0.0)                                 # ReLU
    # Dropout: identity (eval path).

    # ffw2: (TB,H)@(H,1) replaced by VPU multiply + cross-lane (XLU) reduction.
    y = jnp.sum(h * w2_ref[...], axis=-1) + b2_ref[0, 0]    # (TB,)
    out_ref[...] = y.reshape(1, -1).astype(out_ref.dtype)   # lane-dense (1,TB)


@functools.partial(jax.jit, static_argnames=("tile_b",))
def hybrid_forward(x, w1, b1, gamma, beta, w2, b2, *, tile_b=DEFAULT_TILE_B):
    """x: (B,N) f32; w1: (N,H); b1/gamma/beta/w2: (1,H); b2: (1,1) -> (B,1).

    b1 is accepted for interface parity with the PyTorch module but is not
    needed: training-mode BatchNorm cancels a constant per-feature shift."""
    del b1
    B, N = x.shape
    H = w1.shape[1]

    # Batch tiling / padding. Small batches use one 8-aligned tile; large
    # batches use tile_b (multiple of 128 keeps the lane-dense out spec legal).
    if B >= tile_b:
        tb = tile_b
    else:
        tb = max(8, -(-B // 8) * 8)
    b_pad = -(-B // tb) * tb
    if b_pad != B:
        x = jnp.pad(x, ((0, b_pad - B), (0, 0)))
    n_tiles = b_pad // tb

    w1_bf16 = w1.astype(jnp.bfloat16)   # cast once; halves weight HBM traffic

    resident = lambda shape: pl.BlockSpec(shape, lambda i: (0, 0))

    # ---- pass 1: full-batch BN statistics (batch axis is a reduction),
    #      folded scale/shift emitted directly by the last grid step. ----
    scale, shift = pl.pallas_call(
        functools.partial(_stats_kernel, batch=B, tile_b=tb),
        out_shape=(jax.ShapeDtypeStruct((1, H), jnp.float32),
                   jax.ShapeDtypeStruct((1, H), jnp.float32)),
        grid_spec=pltpu.PrefetchScalarGridSpec(
            num_scalar_prefetch=0,
            grid=(n_tiles,),
            in_specs=[
                pl.BlockSpec((tb, N), lambda i: (i, 0)),   # x tile (pipelined)
                resident((N, H)),                          # w1 bf16 (resident)
                resident((1, H)),                          # gamma
                resident((1, H)),                          # beta
            ],
            out_specs=(resident((1, H)), resident((1, H))),
            scratch_shapes=[pltpu.VMEM((1, H), jnp.float32),   # sum
                            pltpu.VMEM((1, H), jnp.float32)],  # sum of squares
        ),
        compiler_params=pltpu.CompilerParams(
            dimension_semantics=("arbitrary",),
            vmem_limit_bytes=VMEM_LIMIT_BYTES),
    )(x, w1_bf16, gamma, beta)

    # ---- pass 2: normalize + ReLU + ffw2; batch tiles are independent. ----
    out_row = pl.pallas_call(
        _apply_kernel,
        out_shape=jax.ShapeDtypeStruct((1, b_pad), jnp.float32),
        grid_spec=pltpu.PrefetchScalarGridSpec(
            num_scalar_prefetch=0,
            grid=(n_tiles,),
            in_specs=[
                pl.BlockSpec((tb, N), lambda i: (i, 0)),   # x tile (pipelined)
                resident((N, H)),                          # w1 bf16 (resident)
                resident((1, H)),                          # scale
                resident((1, H)),                          # shift
                resident((1, H)),                          # w2 row
                pl.BlockSpec(memory_space=pltpu.MemorySpace.SMEM),  # b2 scalar
            ],
            out_specs=pl.BlockSpec((1, tb), lambda i: (0, i)),  # lane-dense
        ),
        compiler_params=pltpu.CompilerParams(
            dimension_semantics=("parallel",),   # shards over v7x's 2 TCs
            vmem_limit_bytes=VMEM_LIMIT_BYTES),
    )(x, w1_bf16, scale, shift, w2, b2)

    return out_row[0, :B].reshape(B, 1)


def init_params(key, n, hd_sz):
    """PyTorch-default init; ffw1.weight stored transposed as (n, hd_sz),
    ffw2.weight kept in its native (1, hd_sz) row form."""
    k1, k2, k3, k4 = jax.random.split(key, 4)
    bound1 = 1.0 / jnp.sqrt(n)
    bound2 = 1.0 / jnp.sqrt(hd_sz)
    w1 = jax.random.uniform(k1, (n, hd_sz), jnp.float32, -bound1, bound1)
    b1 = jax.random.uniform(k2, (1, hd_sz), jnp.float32, -bound1, bound1)
    gamma = jnp.ones((1, hd_sz), jnp.float32)
    beta = jnp.zeros((1, hd_sz), jnp.float32)
    w2 = jax.random.uniform(k3, (1, hd_sz), jnp.float32, -bound2, bound2)
    b2 = jax.random.uniform(k4, (1, 1), jnp.float32, -bound2, bound2)
    return w1, b1, gamma, beta, w2, b2


def reference_forward(x, w1, b1, gamma, beta, w2, b2):
    """Pure-JAX reference matching the kernel's numerics (bf16 MXU operands,
    f32 accumulation); differs from pure-f32 PyTorch only by the bf16 input
    rounding of the first matmul. Keeps b1 explicitly (it cancels in BN)."""
    xr = x.astype(jnp.bfloat16).astype(jnp.float32)
    w1r = w1.astype(jnp.bfloat16).astype(jnp.float32)
    h = xr @ w1r + b1
    mean = jnp.mean(h, axis=0, keepdims=True)
    var = jnp.mean((h - mean) ** 2, axis=0, keepdims=True)
    h = (h - mean) * lax.rsqrt(var + BN_EPS)
    h = h * gamma + beta
    h = jnp.maximum(h, 0.0)
    return jnp.sum(h * w2, axis=-1, keepdims=True) + b2


if __name__ == "__main__":
    B, N, H = 8, 16, 32  # batch, input features, hidden size

    key = jax.random.PRNGKey(0)
    kx, kp = jax.random.split(key)
    x = jax.random.normal(kx, (B, N), jnp.float32)
    params = init_params(kp, N, H)

    out = hybrid_forward(x, *params)
    out = jax.block_until_ready(out)

    ref = reference_forward(x, *params)
    assert out.shape == (B, 1), out.shape
    err = float(jnp.max(jnp.abs(out - ref)))
    assert jnp.allclose(out, ref, atol=1e-3, rtol=1e-3), f"max abs err {err}"

    print("KERNEL_OK")
</pallas_src>

<mosaic_0001>
module attributes {stable_mosaic.version = 11 : i64} {
  func.func @_apply_kernel(%arg0: i32, %arg1: memref<8x16xf32, #tpu.memory_space<vmem>>, %arg2: memref<16x32xbf16, #tpu.memory_space<vmem>>, %arg3: memref<1x32xf32, #tpu.memory_space<vmem>>, %arg4: memref<1x32xf32, #tpu.memory_space<vmem>>, %arg5: memref<1x32xf32, #tpu.memory_space<vmem>>, %arg6: memref<1x1xf32, #tpu.memory_space<smem>>, %arg7: memref<1x8xf32, #tpu.memory_space<vmem>>) attributes {dimension_semantics = [#tpu.dimension_semantics<parallel>], iteration_bounds = array<i64: 1>, scalar_prefetch = 0 : i64, scratch_operands = 0 : i64, tpu.core_type = #tpu.core_type<tc>, window_params = [{transform_indices = @transform_0, window_bounds = array<i64: 8, 16>}, {pipeline_mode = #tpu.pipeline_mode<synchronous>, transform_indices = @transform_1, window_bounds = array<i64: 16, 32>}, {pipeline_mode = #tpu.pipeline_mode<synchronous>, transform_indices = @transform_2, window_bounds = array<i64: 1, 32>}, {pipeline_mode = #tpu.pipeline_mode<synchronous>, transform_indices = @transform_3, window_bounds = array<i64: 1, 32>}, {pipeline_mode = #tpu.pipeline_mode<synchronous>, transform_indices = @transform_4, window_bounds = array<i64: 1, 32>}, {transform_indices = @transform_5, window_bounds = array<i64: 1, 1>}, {transform_indices = @transform_6, window_bounds = array<i64: 1, 8>}]} {
    %c0 = arith.constant 0 : index
    %c0_0 = arith.constant 0 : index
    %0 = vector.load %arg1[%c0, %c0_0] : memref<8x16xf32, #tpu.memory_space<vmem>>, vector<8x16xf32>
    %1 = arith.truncf %0 : vector<8x16xf32> to vector<8x16xbf16>
    %c0_1 = arith.constant 0 : index
    %c0_2 = arith.constant 0 : index
    %2 = vector.load %arg2[%c0_1, %c0_2] : memref<16x32xbf16, #tpu.memory_space<vmem>>, vector<16x32xbf16>
    %cst = arith.constant dense<0.000000e+00> : vector<8x32xf32>
    %3 = tpu.matmul %1, %2, %cst {dimension_numbers = #tpu.dot_dimension_numbers<[1], [0], [0], [1], [0, 0, 1, 1], [], []>} : vector<8x16xbf16>, vector<16x32xbf16>, vector<8x32xf32> -> vector<8x32xf32>
    %c0_3 = arith.constant 0 : index
    %c0_4 = arith.constant 0 : index
    %4 = vector.load %arg3[%c0_3, %c0_4] : memref<1x32xf32, #tpu.memory_space<vmem>>, vector<1x32xf32>
    %5 = vector.broadcast %4 : vector<1x32xf32> to vector<8x32xf32>
    %6 = arith.mulf %3, %5 : vector<8x32xf32>
    %c0_5 = arith.constant 0 : index
    %c0_6 = arith.constant 0 : index
    %7 = vector.load %arg4[%c0_5, %c0_6] : memref<1x32xf32, #tpu.memory_space<vmem>>, vector<1x32xf32>
    %8 = vector.broadcast %7 : vector<1x32xf32> to vector<8x32xf32>
    %9 = arith.addf %6, %8 : vector<8x32xf32>
    %cst_7 = arith.constant 0.000000e+00 : f32
    %10 = vector.broadcast %cst_7 : f32 to vector<8x32xf32>
    %11 = arith.maximumf %9, %10 : vector<8x32xf32>
    %c0_8 = arith.constant 0 : index
    %c0_9 = arith.constant 0 : index
    %12 = vector.load %arg5[%c0_8, %c0_9] : memref<1x32xf32, #tpu.memory_space<vmem>>, vector<1x32xf32>
    %13 = vector.broadcast %12 : vector<1x32xf32> to vector<8x32xf32>
    %14 = arith.mulf %11, %13 : vector<8x32xf32>
    %cst_10 = arith.constant dense<0.000000e+00> : vector<8xf32>
    %15 = vector.multi_reduction <add>, %14, %cst_10 [1] : vector<8x32xf32> to vector<8xf32>
    %c0_11 = arith.constant 0 : index
    %c0_12 = arith.constant 0 : index
    %16 = memref.load %arg6[%c0_11, %c0_12] : memref<1x1xf32, #tpu.memory_space<smem>>
    %17 = vector.broadcast %16 : f32 to vector<8xf32>
    %18 = arith.addf %15, %17 : vector<8xf32>
    %19 = vector.shape_cast %18 : vector<8xf32> to vector<1x8xf32>
    %c0_13 = arith.constant 0 : index
    %c0_14 = arith.constant 0 : index
    %20 = vector.load %arg7[%c0_13, %c0_14] : memref<1x8xf32, #tpu.memory_space<vmem>>, vector<1x8xf32>
    tpu.vector_store %arg7[%c0_13, %c0_14], %19 {strides = array<i32>} : memref<1x8xf32, #tpu.memory_space<vmem>>, vector<1x8xf32>,
    return
  }
  func.func @transform_0(%arg0: i32) -> (i32, i32) {
    %c0_i32 = arith.constant 0 : i32
    %c0_i32_0 = arith.constant 0 : i32
    return %arg0, %c0_i32 : i32, i32
  }
  func.func @transform_1(%arg0: i32) -> (i32, i32) {
    %c0_i32 = arith.constant 0 : i32
    %c0_i32_0 = arith.constant 0 : i32
    %c0_i32_1 = arith.constant 0 : i32
    return %c0_i32, %c0_i32_0 : i32, i32
  }
  func.func @transform_2(%arg0: i32) -> (i32, i32) {
    %c0_i32 = arith.constant 0 : i32
    %c0_i32_0 = arith.constant 0 : i32
    %c0_i32_1 = arith.constant 0 : i32
    return %c0_i32, %c0_i32_0 : i32, i32
  }
  func.func @transform_3(%arg0: i32) -> (i32, i32) {
    %c0_i32 = arith.constant 0 : i32
    %c0_i32_0 = arith.constant 0 : i32
    %c0_i32_1 = arith.constant 0 : i32
    return %c0_i32, %c0_i32_0 : i32, i32
  }
  func.func @transform_4(%arg0: i32) -> (i32, i32) {
    %c0_i32 = arith.constant 0 : i32
    %c0_i32_0 = arith.constant 0 : i32
    %c0_i32_1 = arith.constant 0 : i32
    return %c0_i32, %c0_i32_0 : i32, i32
  }
  func.func @transform_5(%arg0: i32) -> (i32, i32) {
    %c0_i32 = arith.constant 0 : i32
    %c0_i32_0 = arith.constant 0 : i32
    %c0_i32_1 = arith.constant 0 : i32
    return %c0_i32, %c0_i32_0 : i32, i32
  }
  func.func @transform_6(%arg0: i32) -> (i32, i32) {
    %c0_i32 = arith.constant 0 : i32
    %c0_i32_0 = arith.constant 0 : i32
    return %c0_i32, %arg0 : i32, i32
  }
}

module attributes {stable_mosaic.version = 11 : i64} {
  func.func @_stats_kernel(%arg0: i32, %arg1: memref<8x16xf32, #tpu.memory_space<vmem>>, %arg2: memref<16x32xbf16, #tpu.memory_space<vmem>>, %arg3: memref<1x32xf32, #tpu.memory_space<vmem>>, %arg4: memref<1x32xf32, #tpu.memory_space<vmem>>, %arg5: memref<1x32xf32, #tpu.memory_space<vmem>>, %arg6: memref<1x32xf32, #tpu.memory_space<vmem>>, %arg7: memref<1x32xf32, #tpu.memory_space<vmem>>, %arg8: memref<1x32xf32, #tpu.memory_space<vmem>>) attributes {dimension_semantics = [#tpu.dimension_semantics<arbitrary>], iteration_bounds = array<i64: 1>, scalar_prefetch = 0 : i64, scratch_operands = 2 : i64, tpu.core_type = #tpu.core_type<tc>, window_params = [{transform_indices = @transform_0, window_bounds = array<i64: 8, 16>}, {pipeline_mode = #tpu.pipeline_mode<synchronous>, transform_indices = @transform_1, window_bounds = array<i64: 16, 32>}, {pipeline_mode = #tpu.pipeline_mode<synchronous>, transform_indices = @transform_2, window_bounds = array<i64: 1, 32>}, {pipeline_mode = #tpu.pipeline_mode<synchronous>, transform_indices = @transform_3, window_bounds = array<i64: 1, 32>}, {pipeline_mode = #tpu.pipeline_mode<synchronous>, transform_indices = @transform_4, window_bounds = array<i64: 1, 32>}, {pipeline_mode = #tpu.pipeline_mode<synchronous>, transform_indices = @transform_5, window_bounds = array<i64: 1, 32>}]} {
    %c0_i32 = arith.constant 0 : i32
    %0 = arith.cmpi eq, %arg0, %c0_i32 : i32
    %1 = arith.extui %0 : i1 to i32
    %c0_i32_0 = arith.constant 0 : i32
    %2 = arith.cmpi ne, %1, %c0_i32_0 : i32
    scf.if %2 {
      %cst_18 = arith.constant 0.000000e+00 : f32
      %31 = vector.broadcast %cst_18 : f32 to vector<1x32xf32>
      %c0_19 = arith.constant 0 : index
      %c0_20 = arith.constant 0 : index
      %32 = vector.load %arg7[%c0_19, %c0_20] : memref<1x32xf32, #tpu.memory_space<vmem>>, vector<1x32xf32>
      tpu.vector_store %arg7[%c0_19, %c0_20], %31 {strides = array<i32>} : memref<1x32xf32, #tpu.memory_space<vmem>>, vector<1x32xf32>,
      %cst_21 = arith.constant 0.000000e+00 : f32
      %33 = vector.broadcast %cst_21 : f32 to vector<1x32xf32>
      %c0_22 = arith.constant 0 : index
      %c0_23 = arith.constant 0 : index
      %34 = vector.load %arg8[%c0_22, %c0_23] : memref<1x32xf32, #tpu.memory_space<vmem>>, vector<1x32xf32>
      tpu.vector_store %arg8[%c0_22, %c0_23], %33 {strides = array<i32>} : memref<1x32xf32, #tpu.memory_space<vmem>>, vector<1x32xf32>,
    } else {
    }
    %c0 = arith.constant 0 : index
    %c0_1 = arith.constant 0 : index
    %3 = vector.load %arg1[%c0, %c0_1] : memref<8x16xf32, #tpu.memory_space<vmem>>, vector<8x16xf32>
    %4 = arith.truncf %3 : vector<8x16xf32> to vector<8x16xbf16>
    %c0_2 = arith.constant 0 : index
    %c0_3 = arith.constant 0 : index
    %5 = vector.load %arg2[%c0_2, %c0_3] : memref<16x32xbf16, #tpu.memory_space<vmem>>, vector<16x32xbf16>
    %cst = arith.constant dense<0.000000e+00> : vector<8x32xf32>
    %6 = tpu.matmul %4, %5, %cst {dimension_numbers = #tpu.dot_dimension_numbers<[1], [0], [0], [1], [0, 0, 1, 1], [], []>} : vector<8x16xbf16>, vector<16x32xbf16>, vector<8x32xf32> -> vector<8x32xf32>
    %7 = tpu.iota {dimensions = array<i32: 0>} : vector<8x1xi32>
    %c8_i32 = arith.constant 8 : i32
    %8 = arith.muli %arg0, %c8_i32 : i32
    %9 = vector.broadcast %8 : i32 to vector<8x1xi32>
    %10 = arith.addi %7, %9 : vector<8x1xi32>
    %c8_i32_4 = arith.constant 8 : i32
    %11 = vector.broadcast %c8_i32_4 : i32 to vector<8x1xi32>
    %12 = arith.cmpi slt, %10, %11 : vector<8x1xi32>
    %cst_5 = arith.constant 0.000000e+00 : f32
    %13 = vector.shape_cast %12 : vector<8x1xi1> to vector<8x1xi1>
    %14 = vector.broadcast %13 : vector<8x1xi1> to vector<8x32xi1>
    %15 = vector.broadcast %cst_5 : f32 to vector<8x32xf32>
    %16 = arith.select %14, %6, %15 : vector<8x32xi1>, vector<8x32xf32>
    %c0_6 = arith.constant 0 : index
    %c0_7 = arith.constant 0 : index
    %17 = vector.load %arg7[%c0_6, %c0_7] : memref<1x32xf32, #tpu.memory_space<vmem>>, vector<1x32xf32>
    %cst_8 = arith.constant dense<0.000000e+00> : vector<32xf32>
    %18 = vector.multi_reduction <add>, %16, %cst_8 [0] : vector<8x32xf32> to vector<32xf32>
    %19 = vector.shape_cast %18 : vector<32xf32> to vector<1x32xf32>
    %20 = arith.addf %17, %19 : vector<1x32xf32>
    %c0_9 = arith.constant 0 : index
    %c0_10 = arith.constant 0 : index
    %21 = vector.load %arg7[%c0_9, %c0_10] : memref<1x32xf32, #tpu.memory_space<vmem>>, vector<1x32xf32>
    tpu.vector_store %arg7[%c0_9, %c0_10], %20 {strides = array<i32>} : memref<1x32xf32, #tpu.memory_space<vmem>>, vector<1x32xf32>,
    %c0_11 = arith.constant 0 : index
    %c0_12 = arith.constant 0 : index
    %22 = vector.load %arg8[%c0_11, %c0_12] : memref<1x32xf32, #tpu.memory_space<vmem>>, vector<1x32xf32>
    %23 = arith.mulf %16, %16 : vector<8x32xf32>
    %cst_13 = arith.constant dense<0.000000e+00> : vector<32xf32>
    %24 = vector.multi_reduction <add>, %23, %cst_13 [0] : vector<8x32xf32> to vector<32xf32>
    %25 = vector.shape_cast %24 : vector<32xf32> to vector<1x32xf32>
    %26 = arith.addf %22, %25 : vector<1x32xf32>
    %c0_14 = arith.constant 0 : index
    %c0_15 = arith.constant 0 : index
    %27 = vector.load %arg8[%c0_14, %c0_15] : memref<1x32xf32, #tpu.memory_space<vmem>>, vector<1x32xf32>
    tpu.vector_store %arg8[%c0_14, %c0_15], %26 {strides = array<i32>} : memref<1x32xf32, #tpu.memory_space<vmem>>, vector<1x32xf32>,
    %c0_i32_16 = arith.constant 0 : i32
    %28 = arith.cmpi eq, %arg0, %c0_i32_16 : i32
    %29 = arith.extui %28 : i1 to i32
    %c0_i32_17 = arith.constant 0 : i32
    %30 = arith.cmpi ne, %29, %c0_i32_17 : i32
    scf.if %30 {
      %c0_18 = arith.constant 0 : index
      %c0_19 = arith.constant 0 : index
      %31 = vector.load %arg7[%c0_18, %c0_19] : memref<1x32xf32, #tpu.memory_space<vmem>>, vector<1x32xf32>
      %cst_20 = arith.constant 1.250000e-01 : f32
      %32 = vector.broadcast %cst_20 : f32 to vector<1x32xf32>
      %33 = arith.mulf %31, %32 : vector<1x32xf32>
      %c0_21 = arith.constant 0 : index
      %c0_22 = arith.constant 0 : index
      %34 = vector.load %arg8[%c0_21, %c0_22] : memref<1x32xf32, #tpu.memory_space<vmem>>, vector<1x32xf32>
      %cst_23 = arith.constant 1.250000e-01 : f32
      %35 = vector.broadcast %cst_23 : f32 to vector<1x32xf32>
      %36 = arith.mulf %34, %35 : vector<1x32xf32>
      %37 = arith.mulf %33, %33 : vector<1x32xf32>
      %38 = arith.subf %36, %37 : vector<1x32xf32>
      %c0_24 = arith.constant 0 : index
      %c0_25 = arith.constant 0 : index
      %39 = vector.load %arg3[%c0_24, %c0_25] : memref<1x32xf32, #tpu.memory_space<vmem>>, vector<1x32xf32>
      %cst_26 = arith.constant 9.99999974E-6 : f32
      %40 = vector.broadcast %cst_26 : f32 to vector<1x32xf32>
      %41 = arith.addf %38, %40 : vector<1x32xf32>
      %42 = math.rsqrt %41 : vector<1x32xf32>
      %43 = arith.mulf %39, %42 : vector<1x32xf32>
      %c0_27 = arith.constant 0 : index
      %c0_28 = arith.constant 0 : index
      %44 = vector.load %arg5[%c0_27, %c0_28] : memref<1x32xf32, #tpu.memory_space<vmem>>, vector<1x32xf32>
      tpu.vector_store %arg5[%c0_27, %c0_28], %43 {strides = array<i32>} : memref<1x32xf32, #tpu.memory_space<vmem>>, vector<1x32xf32>,
      %c0_29 = arith.constant 0 : index
      %c0_30 = arith.constant 0 : index
      %45 = vector.load %arg4[%c0_29, %c0_30] : memref<1x32xf32, #tpu.memory_space<vmem>>, vector<1x32xf32>
      %46 = arith.mulf %33, %43 : vector<1x32xf32>
      %47 = arith.subf %45, %46 : vector<1x32xf32>
      %c0_31 = arith.constant 0 : index
      %c0_32 = arith.constant 0 : index
      %48 = vector.load %arg6[%c0_31, %c0_32] : memref<1x32xf32, #tpu.memory_space<vmem>>, vector<1x32xf32>
      tpu.vector_store %arg6[%c0_31, %c0_32], %47 {strides = array<i32>} : memref<1x32xf32, #tpu.memory_space<vmem>>, vector<1x32xf32>,
    } else {
    }
    return
  }
  func.func @transform_0(%arg0: i32) -> (i32, i32) {
    %c0_i32 = arith.constant 0 : i32
    %c0_i32_0 = arith.constant 0 : i32
    return %arg0, %c0_i32 : i32, i32
  }
  func.func @transform_1(%arg0: i32) -> (i32, i32) {
    %c0_i32 = arith.constant 0 : i32
    %c0_i32_0 = arith.constant 0 : i32
    %c0_i32_1 = arith.constant 0 : i32
    return %c0_i32, %c0_i32_0 : i32, i32
  }
  func.func @transform_2(%arg0: i32) -> (i32, i32) {
    %c0_i32 = arith.constant 0 : i32
    %c0_i32_0 = arith.constant 0 : i32
    %c0_i32_1 = arith.constant 0 : i32
    return %c0_i32, %c0_i32_0 : i32, i32
  }
  func.func @transform_3(%arg0: i32) -> (i32, i32) {
    %c0_i32 = arith.constant 0 : i32
    %c0_i32_0 = arith.constant 0 : i32
    %c0_i32_1 = arith.constant 0 : i32
    return %c0_i32, %c0_i32_0 : i32, i32
  }
  func.func @transform_4(%arg0: i32) -> (i32, i32) {
    %c0_i32 = arith.constant 0 : i32
    %c0_i32_0 = arith.constant 0 : i32
    %c0_i32_1 = arith.constant 0 : i32
    return %c0_i32, %c0_i32_0 : i32, i32
  }
  func.func @transform_5(%arg0: i32) -> (i32, i32) {
    %c0_i32 = arith.constant 0 : i32
    %c0_i32_0 = arith.constant 0 : i32
    %c0_i32_1 = arith.constant 0 : i32
    return %c0_i32, %c0_i32_0 : i32, i32
  }
}

</mosaic_0001>

<llo_original>
// kernel: hybrid_forward.3
$region0: #{hybrid_forward.3}
  #allocation0 [shape = 'u32[]', space=smem, size = 0x4, offset = 0x4, fixed_abs, tag = 'smem constant byte address 0x4 - core index']
  #allocation1 [shape = 'u32[144,128]{1,0:T(1,128)}', space=vmem, size = 0x12000, scoped, tag = 'internal scratch']
  #allocation2 [shape = 'f32[1,1]{1,0:T(1,128)S(6)}', space=smem, size = 0x200, scoped, tag = 'scoped memory for hybrid_forward.3']
  %s0 = inlined_call_operand.vmem [shape: f32[8,16], index: 0, kind: input, shape index: {}]
  %s1 = inlined_call_operand.vmem [shape: bf16[16,32], index: 1, kind: input, shape index: {}]
  %s2 = inlined_call_operand.vmem [shape: f32[1,32], index: 2, kind: input, shape index: {}]
  %s3 = inlined_call_operand.vmem [shape: f32[1,32], index: 3, kind: input, shape index: {}]
  %s4 = inlined_call_operand.vmem [shape: f32[1,32], index: 4, kind: input, shape index: {}]
  %s5 = inlined_call_operand.<no memory space> [shape: f32[1,1], index: 5, kind: input, shape index: {}]
  %s6 = inlined_call_operand.hbm [shape: f32[1,8], index: 6, kind: output, shape index: {}]
  %s7 = sld [smem:[#allocation0]]
  $region34: #{hybrid_forward.3} parent=0
    _
  %s9 = ssub.s32 1, %s7
  %s10 = scalar_select 0, %s9, %s7
  %11 = sst [smem:[#allocation2]] %s5
  $region1: #{hybrid_forward.3} parent=0
    #allocation3 [shape = 'u8[512]{0}', space=vmem, size = 0x400, scoped, tag = 'output window, operand 0, single buffered']
    #allocation4 [shape = 's32[1]{0}', space=sflag, size = 0x4, scoped, tag = 'scoped memory for hybrid_forward.3']
    %12 = vsyncpa [#allocation4], 0
    // Predicated region
    $region2: #{hybrid_forward.3} parent=1 // pred_check
      _
    $region3: #{hybrid_forward.3} parent=1 // pred_check_branch
      %14 = sbr.rel (0) target = $region5
    $region4: #{hybrid_forward.3} parent=1 // pred_region
      _
    $region5: #{hybrid_forward.3} parent=1 // pred_fallthru
      _
    // Predicated region
    $region6: #{hybrid_forward.3} parent=1 // pred_check
      _
    $region7: #{hybrid_forward.3} parent=1 // pred_check_branch
      %16 = sbr.rel (0) target = $region9
    $region8: #{hybrid_forward.3} parent=1 // pred_region
      _
    $region9: #{hybrid_forward.3} parent=1 // pred_fallthru
      _
    // Predicated region
    $region10: #{hybrid_forward.3} parent=1 // pred_check
      _
    $region11: #{hybrid_forward.3} parent=1 // pred_check_branch
      %18 = sbr.rel (0) target = $region13
    $region12: #{hybrid_forward.3} parent=1 // pred_region
      _
    $region13: #{hybrid_forward.3} parent=1 // pred_fallthru
      _
    // Predicated region
    $region14: #{hybrid_forward.3} parent=1 // pred_check
      _
    $region15: #{hybrid_forward.3} parent=1 // pred_check_branch
      %20 = sbr.rel (0) target = $region17
    $region16: #{hybrid_forward.3} parent=1 // pred_region
      _
    $region17: #{hybrid_forward.3} parent=1 // pred_fallthru
      _
    // Predicated region
    $region18: #{hybrid_forward.3} parent=1 // pred_check
      _
    $region19: #{hybrid_forward.3} parent=1 // pred_check_branch
      %22 = sbr.rel (0) target = $region21
    $region20: #{hybrid_forward.3} parent=1 // pred_region
      _
    $region21: #{hybrid_forward.3} parent=1 // pred_fallthru
      _
    // Predicated region
    $region22: #{hybrid_forward.3} parent=1 // pred_check
      _
    $region23: #{hybrid_forward.3} parent=1 // pred_check_branch
      %24 = sbr.rel (0) target = $region25
    $region24: #{hybrid_forward.3} parent=1 // pred_region
      _
    $region25: #{hybrid_forward.3} parent=1 // pred_fallthru
      _
    %v26 = vld [vmem:[%s0] sm:$0xff]
    %v27 = vpack.c.bf16 %v26, %v26
    %v28 = vld [vmem:[%s1] sm:$0xf]
    %v29 = vld [vmem:[%s1 + $0x4] sm:$0xf]
    %v32 = vunpack.c.l.b16 %v28
    %v33 = vunpack.c.l.b16 %v29
    %v34 = vpack.c.b16 %v33, %v32
    %vm36 = vcmask 130048
    %v38 = vsel %vm36, %v27, 0
    %40 = vmatprep.subr.bf16.mxu0 0
    %41 = vmatpush1.bf16.msra.mxu0 %v34
    %42 = vmatprep.subr.bf16.mxu0 0
    %43 = vmatpush1.bf16.msra.mxu0 0
    %44 = vmatprep.subr.bf16.mxu0 0
    %45 = vmatpush1.bf16.msra.mxu0 0
    %46 = vmatprep.subr.bf16.mxu0 0
    %47 = vmatpush1.bf16.msra.mxu0 0
    %48 = vmatprep.subr.bf16.mxu0 0
    %49 = vmatpush1.bf16.msra.mxu0 0
    %50 = vmatprep.subr.bf16.mxu0 0
    %51 = vmatpush1.bf16.msra.mxu0 0
    %52 = vmatprep.subr.bf16.mxu0 0
    %53 = vmatpush1.bf16.msra.mxu0 0
    %54 = vmatprep.subr.bf16.mxu0 0
    %55 = vmatpush1.bf16.msra.mxu0 0
    %56 = vmatprep.subr.bf16.mxu0 0
    %57 = vmatpush1.bf16.msra.mxu0 0
    %58 = vmatprep.subr.bf16.mxu0 0
    %59 = vmatpush1.bf16.msra.mxu0 0
    %60 = vmatprep.subr.bf16.mxu0 0
    %61 = vmatpush1.bf16.msra.mxu0 0
    %62 = vmatprep.subr.bf16.mxu0 0
    %63 = vmatpush1.bf16.msra.mxu0 0
    %64 = vmatprep.subr.bf16.mxu0 0
    %65 = vmatpush1.bf16.msra.mxu0 0
    %66 = vmatprep.subr.bf16.mxu0 0
    %67 = vmatpush1.bf16.msra.mxu0 0
    %68 = vmatprep.subr.bf16.mxu0 0
    %69 = vmatpush1.bf16.msra.mxu0 0
    %70 = vmatprep.subr.bf16.mxu0 0
    %71 = vmatpush1.bf16.msra.mxu0 0
    %72 = vmatprep.mubr.bf16.mxu0 0
    %73 = vmatmul.mubr.bf16.gmra.mrb[0].mxu0 %v38
    %v74 = vpop.f32.mrb[0].mxu0
    %v75 = vadd.f32 0.0, %v74
    %v76 = vpop.f32.mrb[0].mxu0
    %v77 = vpop.f32.mrb[0].mxu0
    %v78 = vpop.f32.mrb[0].mxu0
    %79 = vdwg.mxu0
    %v80 = vld [vmem:[%s2] sm:$0x1]
    %v82 = vlaneseq
    %v83 = vshrl.u32 %v82, 7
    %v84 = vsub.s32 0, %v83
    %v85 = vrot.slane %v80, %v84
    %v87 = vmul.f32 %v75, %v85
    %v88 = vld [vmem:[%s3] sm:$0x1]
    %v90 = vlaneseq
    %v91 = vshrl.u32 %v90, 7
    %v92 = vsub.s32 0, %v91
    %v93 = vrot.slane %v88, %v92
    %v95 = vadd.f32 %v87, %v93
    %v96 = vmax.f32 %v95, 0.0
    %v97 = vld [vmem:[%s4] sm:$0x1]
    %v99 = vlaneseq
    %v100 = vshrl.u32 %v99, 7
    %v101 = vsub.s32 0, %v100
    %v102 = vrot.slane %v97, %v101
    %v104 = vmul.f32 %v96, %v102
    %vm105 = vcmask 261120
    %v106 = vsel %vm105, %v104, 0.0
    %107 = vadd.xlane.f32.xlu0 %v106
    %v108 = vpop.xlane.xlu0 %107
    %s109 = sld [smem:[#allocation2]]
    %v110 = vstv %s109
    %v111 = vadd.f32 %v108, %v110
    %v113 = vlaneseq
    %v114 = vand.u32 %v113, 127
    %v115 = vlaneseq
    %v116 = vshrl.u32 %v115, 7
    %v117 = vsub.s32 %v114, %v116
    %v118 = vrot.slane %v111, %v117
    %vm120 = vcmask 57344
    %121 = vst.msk [vmem:[#allocation3] sm:$0x1] %vm120, %v118
    // Predicated region
    $region26: #{hybrid_forward.3} parent=1 // pred_check
      _
    $region27: #{hybrid_forward.3} parent=1 // pred_check_branch
      %123 = sbr.rel (0) target = $region29
    $region28: #{hybrid_forward.3} parent=1 // pred_region
      %s125 = ssub.s32 16, 16
      %126 = vsyncadd [#allocation4], %s125
      %s128 = sshll.u32 [#allocation3], 4
      %s129 = int_to_ptr.vmem [resolvable:$true] %s128
      %131 = dma.vmem_to_hbm [thread:$0]  %s129, 16, %s6, [#allocation4]
    $region29: #{hybrid_forward.3} parent=1 // pred_fallthru
      _
    // Predicated region
    $region30: #{hybrid_forward.3} parent=1 // pred_check
      _
    $region31: #{hybrid_forward.3} parent=1 // pred_check_branch
      %133 = sbr.rel (0) target = $region33
    $region32: #{hybrid_forward.3} parent=1 // pred_region
      %134 = dma.done [#allocation4], 16
    $region33: #{hybrid_forward.3} parent=1 // pred_fallthru
      _
    %135 = vsyncpa [#allocation4], 1

// kernel: hybrid_forward.2
$region0: #{hybrid_forward.2}
  #allocation0 [shape = 'u32[]', space=smem, size = 0x4, offset = 0x4, fixed_abs, tag = 'smem constant byte address 0x4 - core index']
  #allocation1 [shape = 'u32[144,128]{1,0:T(1,128)}', space=vmem, size = 0x12000, scoped, tag = 'internal scratch']
  #allocation2 [shape = 'f32[1,32]{1,0:T(1,128)}', space=vmem, size = 0x200, scoped, tag = 'scratch operand']
  #allocation3 [shape = 'f32[1,32]{1,0:T(1,128)}', space=vmem, size = 0x200, scoped, tag = 'scratch operand']
  %s0 = inlined_call_operand.vmem [shape: f32[8,16], index: 0, kind: input, shape index: {}]
  %s1 = inlined_call_operand.vmem [shape: bf16[16,32], index: 1, kind: input, shape index: {}]
  %s2 = inlined_call_operand.vmem [shape: f32[1,32], index: 2, kind: input, shape index: {}]
  %s3 = inlined_call_operand.vmem [shape: f32[1,32], index: 3, kind: input, shape index: {}]
  %s4 = inlined_call_operand.vmem [shape: f32[1,32], index: 4, kind: output, shape index: {0}]
  %s5 = inlined_call_operand.vmem [shape: f32[1,32], index: 5, kind: output, shape index: {1}]
  %6 = xla_tuple %s4, %s5
  %s7 = sld [smem:[#allocation0]]
  $region42: #{hybrid_forward.2} parent=0
    _
  %s9 = ssub.s32 1, %s7
  %s10 = scalar_select 0, %s9, %s7
  // Predicated region
  $region2: #{hybrid_forward.2} parent=0 // pred_check
    _
  $region3: #{hybrid_forward.2} parent=0 // pred_check_branch
    %12 = sbr.rel (0) target = $region5
  $region4: #{hybrid_forward.2} parent=0 // pred_region
    _
  $region5: #{hybrid_forward.2} parent=0 // pred_fallthru
    _
  // Predicated region
  $region6: #{hybrid_forward.2} parent=0 // pred_check
    _
  $region7: #{hybrid_forward.2} parent=0 // pred_check_branch
    %14 = sbr.rel (0) target = $region9
  $region8: #{hybrid_forward.2} parent=0 // pred_region
    _
  $region9: #{hybrid_forward.2} parent=0 // pred_fallthru
    _
  // Predicated region
  $region10: #{hybrid_forward.2} parent=0 // pred_check
    _
  $region11: #{hybrid_forward.2} parent=0 // pred_check_branch
    %16 = sbr.rel (0) target = $region13
  $region12: #{hybrid_forward.2} parent=0 // pred_region
    _
  $region13: #{hybrid_forward.2} parent=0 // pred_fallthru
    _
  // Predicated region
  $region14: #{hybrid_forward.2} parent=0 // pred_check
    _
  $region15: #{hybrid_forward.2} parent=0 // pred_check_branch
    %18 = sbr.rel (0) target = $region17
  $region16: #{hybrid_forward.2} parent=0 // pred_region
    _
  $region17: #{hybrid_forward.2} parent=0 // pred_fallthru
    _
  %p20 = scmp.eq.s32.totalorder 0, 0
  // Predicated region
  $region18: #{hybrid_forward.2} parent=0 // pred_check
    %p21 = pneg %p20
  $region19: #{hybrid_forward.2} parent=0 // pred_check_branch
    %23 = sbr.rel (%p21) target = $region21
  $region20: #{hybrid_forward.2} parent=0 // pred_region
    %vm24 = vcmask 253952
    %25 = vst.msk [vmem:[#allocation2] sm:$0x1] %vm24, 0.0
    %26 = vst.msk [vmem:[#allocation3] sm:$0x1] %vm24, 0.0
  $region21: #{hybrid_forward.2} parent=0 // pred_fallthru
    _
  %v27 = vld [vmem:[%s0] sm:$0xff]
  %v28 = vpack.c.bf16 %v27, %v27
  %v29 = vld [vmem:[%s1] sm:$0xf]
  %v30 = vld [vmem:[%s1 + $0x4] sm:$0xf]
  %v33 = vunpack.c.l.b16 %v29
  %v34 = vunpack.c.l.b16 %v30
  %v35 = vpack.c.b16 %v34, %v33
  %vm37 = vcmask 130048
  %v39 = vsel %vm37, %v28, 0
  %41 = vmatprep.subr.bf16.mxu0 0
  %42 = vmatpush1.bf16.msra.mxu0 %v35
  %43 = vmatprep.subr.bf16.mxu0 0
  %44 = vmatpush1.bf16.msra.mxu0 0
  %45 = vmatprep.subr.bf16.mxu0 0
  %46 = vmatpush1.bf16.msra.mxu0 0
  %47 = vmatprep.subr.bf16.mxu0 0
  %48 = vmatpush1.bf16.msra.mxu0 0
  %49 = vmatprep.subr.bf16.mxu0 0
  %50 = vmatpush1.bf16.msra.mxu0 0
  %51 = vmatprep.subr.bf16.mxu0 0
  %52 = vmatpush1.bf16.msra.mxu0 0
  %53 = vmatprep.subr.bf16.mxu0 0
  %54 = vmatpush1.bf16.msra.mxu0 0
  %55 = vmatprep.subr.bf16.mxu0 0
  %56 = vmatpush1.bf16.msra.mxu0 0
  %57 = vmatprep.subr.bf16.mxu0 0
  %58 = vmatpush1.bf16.msra.mxu0 0
  %59 = vmatprep.subr.bf16.mxu0 0
  %60 = vmatpush1.bf16.msra.mxu0 0
  %61 = vmatprep.subr.bf16.mxu0 0
  %62 = vmatpush1.bf16.msra.mxu0 0
  %63 = vmatprep.subr.bf16.mxu0 0
  %64 = vmatpush1.bf16.msra.mxu0 0
  %65 = vmatprep.subr.bf16.mxu0 0
  %66 = vmatpush1.bf16.msra.mxu0 0
  %67 = vmatprep.subr.bf16.mxu0 0
  %68 = vmatpush1.bf16.msra.mxu0 0
  %69 = vmatprep.subr.bf16.mxu0 0
  %70 = vmatpush1.bf16.msra.mxu0 0
  %71 = vmatprep.subr.bf16.mxu0 0
  %72 = vmatpush1.bf16.msra.mxu0 0
  %73 = vmatprep.mubr.bf16.mxu0 0
  %74 = vmatmul.mubr.bf16.gmra.mrb[0].mxu0 %v39
  %v75 = vpop.f32.mrb[0].mxu0
  %v76 = vadd.f32 0.0, %v75
  %v77 = vpop.f32.mrb[0].mxu0
  %v78 = vpop.f32.mrb[0].mxu0
  %v79 = vpop.f32.mrb[0].mxu0
  %80 = vdwg.mxu0
  %v81 = vlaneseq
  %v82 = vshrl.u32 %v81, 7
  %s83 = smul.u32 0, 8
  %v84 = vstv %s83
  %v85 = vadd.s32 %v82, %v84
  %vm86 = vcmp.lt.s32.totalorder %v85, 8
  %v87 = vsel %vm86, 1, 0
  %vm88 = vcmp.eq.s32.totalorder %v87, 1
  %v89 = vsel %vm88, %v76, 0.0
  %v90 = vld [vmem:[#allocation2] sm:$0x1]
  %vm91 = vcmask 261120
  %v92 = vsel %vm91, %v89, 0.0
  %v93 = vrot.slane %v92, 4
  %v94 = vadd.f32 %v92, %v93
  %v95 = vrot.slane %v94, 2
  %v96 = vadd.f32 %v94, %v95
  %v97 = vrot.slane %v96, 1
  %v98 = vadd.f32 %v96, %v97
  %v99 = vadd.f32 %v90, %v98
  %vm100 = vcmask 253952
  %101 = vst.msk [vmem:[#allocation2] sm:$0x1] %vm100, %v99
  %v102 = vld [vmem:[#allocation3] sm:$0x1]
  %v103 = vmul.f32 %v89, %v89
  %v104 = vsel %vm91, %v103, 0.0
  %v105 = vrot.slane %v104, 4
  %v106 = vadd.f32 %v104, %v105
  %v107 = vrot.slane %v106, 2
  %v108 = vadd.f32 %v106, %v107
  %v109 = vrot.slane %v108, 1
  %v110 = vadd.f32 %v108, %v109
  %v111 = vadd.f32 %v102, %v110
  %112 = vst.msk [vmem:[#allocation3] sm:$0x1] %vm100, %v111
  // Predicated region
  $region22: #{hybrid_forward.2} parent=0 // pred_check
    %p113 = pneg %p20
  $region23: #{hybrid_forward.2} parent=0 // pred_check_branch
    %115 = sbr.rel (%p113) target = $region25
  $region24: #{hybrid_forward.2} parent=0 // pred_region
    %v116 = vld [vmem:[#allocation2] sm:$0x1]
    %v117 = vmul.f32 %v116, 0.125
    %v118 = vld [vmem:[#allocation3] sm:$0x1]
    %v119 = vmul.f32 %v118, 0.125
    %v120 = vmul.f32 %v117, %v117
    %v121 = vsub.f32 %v119, %v120
    %v122 = vld [vmem:[%s2] sm:$0x1]
    %v123 = vadd.f32 %v121, 1e-05
    %v124 = vrsqrt.pop %v123
    %v125 = vmul.f32 %v122, %v124
    %126 = vst.msk [vmem:[%s4] sm:$0x1] %vm100, %v125
    %v127 = vld [vmem:[%s3] sm:$0x1]
    %v128 = vmul.f32 %v117, %v125
    %v129 = vsub.f32 %v127, %v128
    %130 = vst.msk [vmem:[%s5] sm:$0x1] %vm100, %v129
  $region25: #{hybrid_forward.2} parent=0 // pred_fallthru
    _
  // Predicated region
  $region26: #{hybrid_forward.2} parent=0 // pred_check
    _
  $region27: #{hybrid_forward.2} parent=0 // pred_check_branch
    %132 = sbr.rel (0) target = $region29
  $region28: #{hybrid_forward.2} parent=0 // pred_region
    _
  $region29: #{hybrid_forward.2} parent=0 // pred_fallthru
    _
  // Predicated region
  $region30: #{hybrid_forward.2} parent=0 // pred_check
    _
  $region31: #{hybrid_forward.2} parent=0 // pred_check_branch
    %134 = sbr.rel (0) target = $region33
  $region32: #{hybrid_forward.2} parent=0 // pred_region
    _
  $region33: #{hybrid_forward.2} parent=0 // pred_fallthru
    _
  // Predicated region
  $region34: #{hybrid_forward.2} parent=0 // pred_check
    _
  $region35: #{hybrid_forward.2} parent=0 // pred_check_branch
    %136 = sbr.rel (0) target = $region37
  $region36: #{hybrid_forward.2} parent=0 // pred_region
    _
  $region37: #{hybrid_forward.2} parent=0 // pred_fallthru
    _
  // Predicated region
  $region38: #{hybrid_forward.2} parent=0 // pred_check
    _
  $region39: #{hybrid_forward.2} parent=0 // pred_check_branch
    %138 = sbr.rel (0) target = $region41
  $region40: #{hybrid_forward.2} parent=0 // pred_region
    _
  $region41: #{hybrid_forward.2} parent=0 // pred_fallthru
    _

</llo_original>
